<compile_context>
chip_gen: v7x
topology: tpu7x:2x2x1
jax: 0.10.0
libtpu: 0.0.40
codegen_flags: <defaults>
</compile_context>

<pallas_src>
import jax
import jax.numpy as jnp
from jax.experimental import pallas as pl
from jax.experimental.pallas import tpu as pltpu


def _char_lstm_kernel(x_ref, h0_ref, c0_ref, w_ih_ref, w_hh_ref, b_ref,
                      w_out_ref, b_out_ref,
                      y_ref, hn_ref, cn_ref,
                      h_all_sc):
    """Whole-sequence LSTM + output projection in one kernel invocation.

    x_ref    : (T*B, I)  bf16, TIME-MAJOR (row r = t*B + b)
    h0/c0    : (B, H)    f32
    w_ih_ref : (I, 4H)   bf16  (transposed nn.LSTM weight_ih_l0, gate order i,f,g,o)
    w_hh_ref : (H, 4H)   bf16  (transposed nn.LSTM weight_hh_l0)
    b_ref    : (1, 4H)   f32   (b_ih + b_hh)
    w_out_ref: (H, O)    f32   (transposed nn.Linear weight)
    b_out_ref: (1, O)    f32
    y_ref    : (T*B, O)  f32   time-major rows (wrapper does the tiny relayout)
    hn/cn    : (B, H)    f32
    h_all_sc : (T*B, H)  f32 VMEM scratch holding every h_t, time-major
    """
    TB = x_ref.shape[0]
    B, H = h0_ref.shape
    T = TB // B

    # ---- Hoisted input projection (+ fused bias): one MXU matmul for all T,
    # completely off the serial recurrence chain.
    xw = (jnp.dot(x_ref[...], w_ih_ref[...],
                  preferred_element_type=jnp.float32)
          + b_ref[...])                                    # (T*B, 4H) f32

    # Hoisted recurrent weight load.
    w_hh = w_hh_ref[...]                                   # (H, 4H) bf16

    h = h0_ref[...]                                        # (B, H) f32
    c = c0_ref[...]                                        # (B, H) f32

    # Fully unrolled time loop (T is small and static).  Every slice index is a
    # Python int, so all ref/value accesses are static.  Per-step critical
    # path: ONE (B, H) @ (H, 4H) matmul + gate activations + cell update.
    for t in range(T):
        gates = xw[t * B:(t + 1) * B, :] + jnp.dot(
            h.astype(jnp.bfloat16), w_hh,
            preferred_element_type=jnp.float32)            # (B, 4H) f32

        # Full-vreg transcendentals on the EUP, then static lane slices.
        sig = jax.nn.sigmoid(gates)
        tnh = jnp.tanh(gates)
        i_g = sig[:, 0 * H:1 * H]
        f_g = sig[:, 1 * H:2 * H]
        g_g = tnh[:, 2 * H:3 * H]
        o_g = sig[:, 3 * H:4 * H]

        c = f_g * c + i_g * g_g                            # f32 VPU
        h = o_g * jnp.tanh(c)                              # f32 EUP + VPU

        # One contiguous (B, H) slab store per step (time-major), off the
        # critical path (nothing reads h_all_sc until after the loop).
        h_all_sc[pl.ds(t * B, B), :] = h

    hn_ref[...] = h
    cn_ref[...] = c

    # ---- Batched output projection (h2l Linear) hoisted out of the
    # recurrence: one (T*B, H) @ (H, O) matmul + a single slab store.
    y = (jnp.dot(h_all_sc[...], w_out_ref[...],
                 preferred_element_type=jnp.float32)
         + b_out_ref[...])
    y_ref[...] = y.astype(y_ref.dtype)


def char_lstm_forward(x, hidden, params):
    """Mirror of CharLSTM.forward.

    x      : (B, T, I) float32, batch_first (PyTorch convention)
    hidden : (h0, c0), each (1, B, H)
    returns: (output (B, T, O), (h_n (1, B, H), c_n (1, B, H)))
    """
    h0, c0 = hidden
    B, T, I = x.shape
    H = h0.shape[-1]
    O = params["w_out"].shape[0]

    # Time-major flatten of x (tiny, free XLA op) + bf16 MXU operands.
    x_tm = jnp.transpose(x, (1, 0, 2)).reshape(T * B, I).astype(jnp.bfloat16)
    w_ih_T = params["w_ih"].T.astype(jnp.bfloat16)                   # (I, 4H)
    w_hh_T = params["w_hh"].T.astype(jnp.bfloat16)                   # (H, 4H)
    b = (params["b_ih"] + params["b_hh"]).reshape(1, 4 * H).astype(jnp.float32)
    w_out_T = params["w_out"].T.astype(jnp.float32)                  # (H, O)
    b_out = params["b_out"].reshape(1, O).astype(jnp.float32)

    y_tm, h_n, c_n = pl.pallas_call(
        _char_lstm_kernel,
        out_shape=(
            jax.ShapeDtypeStruct((T * B, O), jnp.float32),   # y, time-major rows
            jax.ShapeDtypeStruct((B, H), jnp.float32),       # h_n
            jax.ShapeDtypeStruct((B, H), jnp.float32),       # c_n
        ),
        # No grid: every operand is a single whole-array VMEM block, so the
        # recurrence pays zero per-timestep pipeline overhead.  Footprint is
        # ~tens of KiB — trivially under every generation's VMEM budget.
        scratch_shapes=[pltpu.VMEM((T * B, H), jnp.float32)],
    )(x_tm, h0[0], c0[0], w_ih_T, w_hh_T, b, w_out_T, b_out)

    # (T*B, O) -> (T, B, O) -> (B, T, O): ~1 KiB relayout, free in XLA.
    output = jnp.transpose(y_tm.reshape(T, B, O), (1, 0, 2))
    return output, (h_n[None], c_n[None])


def _reference_forward(x, hidden, params, matmul_dtype=jnp.float32):
    """Pure-JAX reference (PyTorch nn.LSTM + nn.Linear semantics).

    matmul_dtype lets us build a reference whose recurrent matmul operands are
    cast exactly like the kernel's (bf16), for a tight numeric comparison.
    """
    h0, c0 = hidden
    H = h0.shape[-1]
    w_ih_T = params["w_ih"].T.astype(matmul_dtype)
    w_hh_T = params["w_hh"].T.astype(matmul_dtype)
    b = (params["b_ih"] + params["b_hh"])[None, :]

    def step(carry, x_t):
        h, c = carry
        gates = (jnp.dot(x_t.astype(matmul_dtype), w_ih_T,
                         preferred_element_type=jnp.float32)
                 + jnp.dot(h.astype(matmul_dtype), w_hh_T,
                           preferred_element_type=jnp.float32)
                 + b)
        i = jax.nn.sigmoid(gates[:, 0 * H:1 * H])
        f = jax.nn.sigmoid(gates[:, 1 * H:2 * H])
        g = jnp.tanh(gates[:, 2 * H:3 * H])
        o = jax.nn.sigmoid(gates[:, 3 * H:4 * H])
        c_new = f * c + i * g
        h_new = o * jnp.tanh(c_new)
        return (h_new, c_new), h_new

    (h_n, c_n), hs = jax.lax.scan(step, (h0[0], c0[0]),
                                  jnp.transpose(x, (1, 0, 2)))
    out = jnp.einsum("tbh,ho->bto", hs, params["w_out"].T) + params["b_out"]
    return out, (h_n[None], c_n[None])


if __name__ == "__main__":
    # Small shapes consistent with the module's forward:
    # batch=2, seq=8, input_size=8, hidden_size=32, output_size=16, n_layers=1.
    B, T, I, H, O = 2, 8, 8, 32, 16

    key = jax.random.PRNGKey(0)
    ks = jax.random.split(key, 8)
    scale = 1.0 / jnp.sqrt(H)
    params = {
        "w_ih": jax.random.uniform(ks[0], (4 * H, I), jnp.float32, -scale, scale),
        "w_hh": jax.random.uniform(ks[1], (4 * H, H), jnp.float32, -scale, scale),
        "b_ih": jax.random.uniform(ks[2], (4 * H,), jnp.float32, -scale, scale),
        "b_hh": jax.random.uniform(ks[3], (4 * H,), jnp.float32, -scale, scale),
        "w_out": jax.random.uniform(ks[4], (O, H), jnp.float32, -scale, scale),
        "b_out": jax.random.uniform(ks[5], (O,), jnp.float32, -scale, scale),
    }

    x = jax.random.normal(ks[6], (B, T, I), jnp.float32)
    # init_hidden() equivalent (n_layers=1), broadcast to actual batch B:
    h0 = jnp.zeros((1, B, H), jnp.float32)
    c0 = jnp.zeros((1, B, H), jnp.float32)

    out, (h_n, c_n) = char_lstm_forward(x, (h0, c0), params)
    out = jax.block_until_ready(out)
    h_n = jax.block_until_ready(h_n)
    c_n = jax.block_until_ready(c_n)

    assert out.shape == (B, T, O)
    assert h_n.shape == (1, B, H) and c_n.shape == (1, B, H)

    # Tight check vs. a reference using the same bf16 matmul operands.
    r_out, (r_hn, r_cn) = _reference_forward(x, (h0, c0), params,
                                             matmul_dtype=jnp.bfloat16)
    assert jnp.allclose(out, r_out, atol=5e-3, rtol=5e-3)
    assert jnp.allclose(h_n, r_hn, atol=5e-3, rtol=5e-3)
    assert jnp.allclose(c_n, r_cn, atol=5e-3, rtol=5e-3)

    # Looser check vs. pure-f32 PyTorch semantics (kernel uses bf16 MXU inputs).
    f_out, (f_hn, f_cn) = _reference_forward(x, (h0, c0), params,
                                             matmul_dtype=jnp.float32)
    assert jnp.allclose(out, f_out, atol=5e-2, rtol=5e-2)
    assert jnp.allclose(h_n, f_hn, atol=5e-2, rtol=5e-2)
    assert jnp.allclose(c_n, f_cn, atol=5e-2, rtol=5e-2)

    print("KERNEL_OK")
</pallas_src>

<mosaic_0001>
module attributes {stable_mosaic.version = 11 : i64} {
  func.func @_char_lstm_kernel(%arg0: memref<16x8xbf16, #tpu.memory_space<vmem>>, %arg1: memref<2x32xf32, #tpu.memory_space<vmem>>, %arg2: memref<2x32xf32, #tpu.memory_space<vmem>>, %arg3: memref<8x128xbf16, #tpu.memory_space<vmem>>, %arg4: memref<32x128xbf16, #tpu.memory_space<vmem>>, %arg5: memref<1x128xf32, #tpu.memory_space<vmem>>, %arg6: memref<32x16xf32, #tpu.memory_space<vmem>>, %arg7: memref<1x16xf32, #tpu.memory_space<vmem>>, %arg8: memref<16x16xf32, #tpu.memory_space<vmem>>, %arg9: memref<2x32xf32, #tpu.memory_space<vmem>>, %arg10: memref<2x32xf32, #tpu.memory_space<vmem>>, %arg11: memref<16x32xf32, #tpu.memory_space<vmem>>) attributes {dimension_semantics = [], scalar_prefetch = 0 : i64, scratch_operands = 1 : i64, tpu.core_type = #tpu.core_type<tc>} {
    %c0 = arith.constant 0 : index
    %c0_0 = arith.constant 0 : index
    %0 = vector.load %arg0[%c0, %c0_0] : memref<16x8xbf16, #tpu.memory_space<vmem>>, vector<16x8xbf16>
    %c0_1 = arith.constant 0 : index
    %c0_2 = arith.constant 0 : index
    %1 = vector.load %arg3[%c0_1, %c0_2] : memref<8x128xbf16, #tpu.memory_space<vmem>>, vector<8x128xbf16>
    %cst = arith.constant dense<0.000000e+00> : vector<16x128xf32>
    %2 = tpu.matmul %0, %1, %cst {dimension_numbers = #tpu.dot_dimension_numbers<[1], [0], [0], [1], [0, 0, 1, 1], [], []>} : vector<16x8xbf16>, vector<8x128xbf16>, vector<16x128xf32> -> vector<16x128xf32>
    %c0_3 = arith.constant 0 : index
    %c0_4 = arith.constant 0 : index
    %3 = vector.load %arg5[%c0_3, %c0_4] : memref<1x128xf32, #tpu.memory_space<vmem>>, vector<1x128xf32>
    %4 = vector.broadcast %3 : vector<1x128xf32> to vector<16x128xf32>
    %5 = arith.addf %2, %4 : vector<16x128xf32>
    %c0_5 = arith.constant 0 : index
    %c0_6 = arith.constant 0 : index
    %6 = vector.load %arg4[%c0_5, %c0_6] : memref<32x128xbf16, #tpu.memory_space<vmem>>, vector<32x128xbf16>
    %c0_7 = arith.constant 0 : index
    %c0_8 = arith.constant 0 : index
    %7 = vector.load %arg1[%c0_7, %c0_8] : memref<2x32xf32, #tpu.memory_space<vmem>>, vector<2x32xf32>
    %c0_9 = arith.constant 0 : index
    %c0_10 = arith.constant 0 : index
    %8 = vector.load %arg2[%c0_9, %c0_10] : memref<2x32xf32, #tpu.memory_space<vmem>>, vector<2x32xf32>
    %9 = vector.extract_strided_slice %5 {offsets = [0, 0], sizes = [2, 128], strides = [1, 1]} : vector<16x128xf32> to vector<2x128xf32>
    %10 = arith.truncf %7 : vector<2x32xf32> to vector<2x32xbf16>
    %cst_11 = arith.constant dense<0.000000e+00> : vector<2x128xf32>
    %11 = tpu.matmul %10, %6, %cst_11 {dimension_numbers = #tpu.dot_dimension_numbers<[1], [0], [0], [1], [0, 0, 1, 1], [], []>} : vector<2x32xbf16>, vector<32x128xbf16>, vector<2x128xf32> -> vector<2x128xf32>
    %12 = arith.addf %9, %11 : vector<2x128xf32>
    %13 = arith.negf %12 : vector<2x128xf32>
    %14 = math.exp %13 : vector<2x128xf32>
    %cst_12 = arith.constant 1.000000e+00 : f32
    %15 = vector.broadcast %cst_12 : f32 to vector<2x128xf32>
    %16 = arith.addf %15, %14 : vector<2x128xf32>
    %17 = arith.divf %15, %16 : vector<2x128xf32>
    %18 = math.tanh %12 : vector<2x128xf32>
    %19 = vector.extract_strided_slice %17 {offsets = [0, 0], sizes = [2, 32], strides = [1, 1]} : vector<2x128xf32> to vector<2x32xf32>
    %20 = vector.extract_strided_slice %17 {offsets = [0, 32], sizes = [2, 32], strides = [1, 1]} : vector<2x128xf32> to vector<2x32xf32>
    %21 = vector.extract_strided_slice %18 {offsets = [0, 64], sizes = [2, 32], strides = [1, 1]} : vector<2x128xf32> to vector<2x32xf32>
    %22 = vector.extract_strided_slice %17 {offsets = [0, 96], sizes = [2, 32], strides = [1, 1]} : vector<2x128xf32> to vector<2x32xf32>
    %23 = arith.mulf %20, %8 : vector<2x32xf32>
    %24 = arith.mulf %19, %21 : vector<2x32xf32>
    %25 = arith.addf %23, %24 : vector<2x32xf32>
    %26 = math.tanh %25 : vector<2x32xf32>
    %27 = arith.mulf %22, %26 : vector<2x32xf32>
    %c0_13 = arith.constant 0 : index
    %c0_14 = arith.constant 0 : index
    %28 = vector.load %arg11[%c0_13, %c0_14] : memref<16x32xf32, #tpu.memory_space<vmem>>, vector<2x32xf32>
    tpu.vector_store %arg11[%c0_13, %c0_14], %27 {strides = array<i32>} : memref<16x32xf32, #tpu.memory_space<vmem>>, vector<2x32xf32>,
    %29 = vector.extract_strided_slice %5 {offsets = [2, 0], sizes = [2, 128], strides = [1, 1]} : vector<16x128xf32> to vector<2x128xf32>
    %30 = arith.truncf %27 : vector<2x32xf32> to vector<2x32xbf16>
    %cst_15 = arith.constant dense<0.000000e+00> : vector<2x128xf32>
    %31 = tpu.matmul %30, %6, %cst_15 {dimension_numbers = #tpu.dot_dimension_numbers<[1], [0], [0], [1], [0, 0, 1, 1], [], []>} : vector<2x32xbf16>, vector<32x128xbf16>, vector<2x128xf32> -> vector<2x128xf32>
    %32 = arith.addf %29, %31 : vector<2x128xf32>
    %33 = arith.negf %32 : vector<2x128xf32>
    %34 = math.exp %33 : vector<2x128xf32>
    %cst_16 = arith.constant 1.000000e+00 : f32
    %35 = vector.broadcast %cst_16 : f32 to vector<2x128xf32>
    %36 = arith.addf %35, %34 : vector<2x128xf32>
    %37 = arith.divf %35, %36 : vector<2x128xf32>
    %38 = math.tanh %32 : vector<2x128xf32>
    %39 = vector.extract_strided_slice %37 {offsets = [0, 0], sizes = [2, 32], strides = [1, 1]} : vector<2x128xf32> to vector<2x32xf32>
    %40 = vector.extract_strided_slice %37 {offsets = [0, 32], sizes = [2, 32], strides = [1, 1]} : vector<2x128xf32> to vector<2x32xf32>
    %41 = vector.extract_strided_slice %38 {offsets = [0, 64], sizes = [2, 32], strides = [1, 1]} : vector<2x128xf32> to vector<2x32xf32>
    %42 = vector.extract_strided_slice %37 {offsets = [0, 96], sizes = [2, 32], strides = [1, 1]} : vector<2x128xf32> to vector<2x32xf32>
    %43 = arith.mulf %40, %25 : vector<2x32xf32>
    %44 = arith.mulf %39, %41 : vector<2x32xf32>
    %45 = arith.addf %43, %44 : vector<2x32xf32>
    %46 = math.tanh %45 : vector<2x32xf32>
    %47 = arith.mulf %42, %46 : vector<2x32xf32>
    %c2 = arith.constant 2 : index
    %c0_17 = arith.constant 0 : index
    %48 = vector.load %arg11[%c2, %c0_17] : memref<16x32xf32, #tpu.memory_space<vmem>>, vector<2x32xf32>
    tpu.vector_store %arg11[%c2, %c0_17], %47 {strides = array<i32>} : memref<16x32xf32, #tpu.memory_space<vmem>>, vector<2x32xf32>,
    %49 = vector.extract_strided_slice %5 {offsets = [4, 0], sizes = [2, 128], strides = [1, 1]} : vector<16x128xf32> to vector<2x128xf32>
    %50 = arith.truncf %47 : vector<2x32xf32> to vector<2x32xbf16>
    %cst_18 = arith.constant dense<0.000000e+00> : vector<2x128xf32>
    %51 = tpu.matmul %50, %6, %cst_18 {dimension_numbers = #tpu.dot_dimension_numbers<[1], [0], [0], [1], [0, 0, 1, 1], [], []>} : vector<2x32xbf16>, vector<32x128xbf16>, vector<2x128xf32> -> vector<2x128xf32>
    %52 = arith.addf %49, %51 : vector<2x128xf32>
    %53 = arith.negf %52 : vector<2x128xf32>
    %54 = math.exp %53 : vector<2x128xf32>
    %cst_19 = arith.constant 1.000000e+00 : f32
    %55 = vector.broadcast %cst_19 : f32 to vector<2x128xf32>
    %56 = arith.addf %55, %54 : vector<2x128xf32>
    %57 = arith.divf %55, %56 : vector<2x128xf32>
    %58 = math.tanh %52 : vector<2x128xf32>
    %59 = vector.extract_strided_slice %57 {offsets = [0, 0], sizes = [2, 32], strides = [1, 1]} : vector<2x128xf32> to vector<2x32xf32>
    %60 = vector.extract_strided_slice %57 {offsets = [0, 32], sizes = [2, 32], strides = [1, 1]} : vector<2x128xf32> to vector<2x32xf32>
    %61 = vector.extract_strided_slice %58 {offsets = [0, 64], sizes = [2, 32], strides = [1, 1]} : vector<2x128xf32> to vector<2x32xf32>
    %62 = vector.extract_strided_slice %57 {offsets = [0, 96], sizes = [2, 32], strides = [1, 1]} : vector<2x128xf32> to vector<2x32xf32>
    %63 = arith.mulf %60, %45 : vector<2x32xf32>
    %64 = arith.mulf %59, %61 : vector<2x32xf32>
    %65 = arith.addf %63, %64 : vector<2x32xf32>
    %66 = math.tanh %65 : vector<2x32xf32>
    %67 = arith.mulf %62, %66 : vector<2x32xf32>
    %c4 = arith.constant 4 : index
    %c0_20 = arith.constant 0 : index
    %68 = vector.load %arg11[%c4, %c0_20] : memref<16x32xf32, #tpu.memory_space<vmem>>, vector<2x32xf32>
    tpu.vector_store %arg11[%c4, %c0_20], %67 {strides = array<i32>} : memref<16x32xf32, #tpu.memory_space<vmem>>, vector<2x32xf32>,
    %69 = vector.extract_strided_slice %5 {offsets = [6, 0], sizes = [2, 128], strides = [1, 1]} : vector<16x128xf32> to vector<2x128xf32>
    %70 = arith.truncf %67 : vector<2x32xf32> to vector<2x32xbf16>
    %cst_21 = arith.constant dense<0.000000e+00> : vector<2x128xf32>
    %71 = tpu.matmul %70, %6, %cst_21 {dimension_numbers = #tpu.dot_dimension_numbers<[1], [0], [0], [1], [0, 0, 1, 1], [], []>} : vector<2x32xbf16>, vector<32x128xbf16>, vector<2x128xf32> -> vector<2x128xf32>
    %72 = arith.addf %69, %71 : vector<2x128xf32>
    %73 = arith.negf %72 : vector<2x128xf32>
    %74 = math.exp %73 : vector<2x128xf32>
    %cst_22 = arith.constant 1.000000e+00 : f32
    %75 = vector.broadcast %cst_22 : f32 to vector<2x128xf32>
    %76 = arith.addf %75, %74 : vector<2x128xf32>
    %77 = arith.divf %75, %76 : vector<2x128xf32>
    %78 = math.tanh %72 : vector<2x128xf32>
    %79 = vector.extract_strided_slice %77 {offsets = [0, 0], sizes = [2, 32], strides = [1, 1]} : vector<2x128xf32> to vector<2x32xf32>
    %80 = vector.extract_strided_slice %77 {offsets = [0, 32], sizes = [2, 32], strides = [1, 1]} : vector<2x128xf32> to vector<2x32xf32>
    %81 = vector.extract_strided_slice %78 {offsets = [0, 64], sizes = [2, 32], strides = [1, 1]} : vector<2x128xf32> to vector<2x32xf32>
    %82 = vector.extract_strided_slice %77 {offsets = [0, 96], sizes = [2, 32], strides = [1, 1]} : vector<2x128xf32> to vector<2x32xf32>
    %83 = arith.mulf %80, %65 : vector<2x32xf32>
    %84 = arith.mulf %79, %81 : vector<2x32xf32>
    %85 = arith.addf %83, %84 : vector<2x32xf32>
    %86 = math.tanh %85 : vector<2x32xf32>
    %87 = arith.mulf %82, %86 : vector<2x32xf32>
    %c6 = arith.constant 6 : index
    %c0_23 = arith.constant 0 : index
    %88 = vector.load %arg11[%c6, %c0_23] : memref<16x32xf32, #tpu.memory_space<vmem>>, vector<2x32xf32>
    tpu.vector_store %arg11[%c6, %c0_23], %87 {strides = array<i32>} : memref<16x32xf32, #tpu.memory_space<vmem>>, vector<2x32xf32>,
    %89 = vector.extract_strided_slice %5 {offsets = [8, 0], sizes = [2, 128], strides = [1, 1]} : vector<16x128xf32> to vector<2x128xf32>
    %90 = arith.truncf %87 : vector<2x32xf32> to vector<2x32xbf16>
    %cst_24 = arith.constant dense<0.000000e+00> : vector<2x128xf32>
    %91 = tpu.matmul %90, %6, %cst_24 {dimension_numbers = #tpu.dot_dimension_numbers<[1], [0], [0], [1], [0, 0, 1, 1], [], []>} : vector<2x32xbf16>, vector<32x128xbf16>, vector<2x128xf32> -> vector<2x128xf32>
    %92 = arith.addf %89, %91 : vector<2x128xf32>
    %93 = arith.negf %92 : vector<2x128xf32>
    %94 = math.exp %93 : vector<2x128xf32>
    %cst_25 = arith.constant 1.000000e+00 : f32
    %95 = vector.broadcast %cst_25 : f32 to vector<2x128xf32>
    %96 = arith.addf %95, %94 : vector<2x128xf32>
    %97 = arith.divf %95, %96 : vector<2x128xf32>
    %98 = math.tanh %92 : vector<2x128xf32>
    %99 = vector.extract_strided_slice %97 {offsets = [0, 0], sizes = [2, 32], strides = [1, 1]} : vector<2x128xf32> to vector<2x32xf32>
    %100 = vector.extract_strided_slice %97 {offsets = [0, 32], sizes = [2, 32], strides = [1, 1]} : vector<2x128xf32> to vector<2x32xf32>
    %101 = vector.extract_strided_slice %98 {offsets = [0, 64], sizes = [2, 32], strides = [1, 1]} : vector<2x128xf32> to vector<2x32xf32>
    %102 = vector.extract_strided_slice %97 {offsets = [0, 96], sizes = [2, 32], strides = [1, 1]} : vector<2x128xf32> to vector<2x32xf32>
    %103 = arith.mulf %100, %85 : vector<2x32xf32>
    %104 = arith.mulf %99, %101 : vector<2x32xf32>
    %105 = arith.addf %103, %104 : vector<2x32xf32>
    %106 = math.tanh %105 : vector<2x32xf32>
    %107 = arith.mulf %102, %106 : vector<2x32xf32>
    %c8 = arith.constant 8 : index
    %c0_26 = arith.constant 0 : index
    %108 = vector.load %arg11[%c8, %c0_26] : memref<16x32xf32, #tpu.memory_space<vmem>>, vector<2x32xf32>
    tpu.vector_store %arg11[%c8, %c0_26], %107 {strides = array<i32>} : memref<16x32xf32, #tpu.memory_space<vmem>>, vector<2x32xf32>,
    %109 = vector.extract_strided_slice %5 {offsets = [10, 0], sizes = [2, 128], strides = [1, 1]} : vector<16x128xf32> to vector<2x128xf32>
    %110 = arith.truncf %107 : vector<2x32xf32> to vector<2x32xbf16>
    %cst_27 = arith.constant dense<0.000000e+00> : vector<2x128xf32>
    %111 = tpu.matmul %110, %6, %cst_27 {dimension_numbers = #tpu.dot_dimension_numbers<[1], [0], [0], [1], [0, 0, 1, 1], [], []>} : vector<2x32xbf16>, vector<32x128xbf16>, vector<2x128xf32> -> vector<2x128xf32>
    %112 = arith.addf %109, %111 : vector<2x128xf32>
    %113 = arith.negf %112 : vector<2x128xf32>
    %114 = math.exp %113 : vector<2x128xf32>
    %cst_28 = arith.constant 1.000000e+00 : f32
    %115 = vector.broadcast %cst_28 : f32 to vector<2x128xf32>
    %116 = arith.addf %115, %114 : vector<2x128xf32>
    %117 = arith.divf %115, %116 : vector<2x128xf32>
    %118 = math.tanh %112 : vector<2x128xf32>
    %119 = vector.extract_strided_slice %117 {offsets = [0, 0], sizes = [2, 32], strides = [1, 1]} : vector<2x128xf32> to vector<2x32xf32>
    %120 = vector.extract_strided_slice %117 {offsets = [0, 32], sizes = [2, 32], strides = [1, 1]} : vector<2x128xf32> to vector<2x32xf32>
    %121 = vector.extract_strided_slice %118 {offsets = [0, 64], sizes = [2, 32], strides = [1, 1]} : vector<2x128xf32> to vector<2x32xf32>
    %122 = vector.extract_strided_slice %117 {offsets = [0, 96], sizes = [2, 32], strides = [1, 1]} : vector<2x128xf32> to vector<2x32xf32>
    %123 = arith.mulf %120, %105 : vector<2x32xf32>
    %124 = arith.mulf %119, %121 : vector<2x32xf32>
    %125 = arith.addf %123, %124 : vector<2x32xf32>
    %126 = math.tanh %125 : vector<2x32xf32>
    %127 = arith.mulf %122, %126 : vector<2x32xf32>
    %c10 = arith.constant 10 : index
    %c0_29 = arith.constant 0 : index
    %128 = vector.load %arg11[%c10, %c0_29] : memref<16x32xf32, #tpu.memory_space<vmem>>, vector<2x32xf32>
    tpu.vector_store %arg11[%c10, %c0_29], %127 {strides = array<i32>} : memref<16x32xf32, #tpu.memory_space<vmem>>, vector<2x32xf32>,
    %129 = vector.extract_strided_slice %5 {offsets = [12, 0], sizes = [2, 128], strides = [1, 1]} : vector<16x128xf32> to vector<2x128xf32>
    %130 = arith.truncf %127 : vector<2x32xf32> to vector<2x32xbf16>
    %cst_30 = arith.constant dense<0.000000e+00> : vector<2x128xf32>
    %131 = tpu.matmul %130, %6, %cst_30 {dimension_numbers = #tpu.dot_dimension_numbers<[1], [0], [0], [1], [0, 0, 1, 1], [], []>} : vector<2x32xbf16>, vector<32x128xbf16>, vector<2x128xf32> -> vector<2x128xf32>
    %132 = arith.addf %129, %131 : vector<2x128xf32>
    %133 = arith.negf %132 : vector<2x128xf32>
    %134 = math.exp %133 : vector<2x128xf32>
    %cst_31 = arith.constant 1.000000e+00 : f32
    %135 = vector.broadcast %cst_31 : f32 to vector<2x128xf32>
    %136 = arith.addf %135, %134 : vector<2x128xf32>
    %137 = arith.divf %135, %136 : vector<2x128xf32>
    %138 = math.tanh %132 : vector<2x128xf32>
    %139 = vector.extract_strided_slice %137 {offsets = [0, 0], sizes = [2, 32], strides = [1, 1]} : vector<2x128xf32> to vector<2x32xf32>
    %140 = vector.extract_strided_slice %137 {offsets = [0, 32], sizes = [2, 32], strides = [1, 1]} : vector<2x128xf32> to vector<2x32xf32>
    %141 = vector.extract_strided_slice %138 {offsets = [0, 64], sizes = [2, 32], strides = [1, 1]} : vector<2x128xf32> to vector<2x32xf32>
    %142 = vector.extract_strided_slice %137 {offsets = [0, 96], sizes = [2, 32], strides = [1, 1]} : vector<2x128xf32> to vector<2x32xf32>
    %143 = arith.mulf %140, %125 : vector<2x32xf32>
    %144 = arith.mulf %139, %141 : vector<2x32xf32>
    %145 = arith.addf %143, %144 : vector<2x32xf32>
    %146 = math.tanh %145 : vector<2x32xf32>
    %147 = arith.mulf %142, %146 : vector<2x32xf32>
    %c12 = arith.constant 12 : index
    %c0_32 = arith.constant 0 : index
    %148 = vector.load %arg11[%c12, %c0_32] : memref<16x32xf32, #tpu.memory_space<vmem>>, vector<2x32xf32>
    tpu.vector_store %arg11[%c12, %c0_32], %147 {strides = array<i32>} : memref<16x32xf32, #tpu.memory_space<vmem>>, vector<2x32xf32>,
    %149 = vector.extract_strided_slice %5 {offsets = [14, 0], sizes = [2, 128], strides = [1, 1]} : vector<16x128xf32> to vector<2x128xf32>
    %150 = arith.truncf %147 : vector<2x32xf32> to vector<2x32xbf16>
    %cst_33 = arith.constant dense<0.000000e+00> : vector<2x128xf32>
    %151 = tpu.matmul %150, %6, %cst_33 {dimension_numbers = #tpu.dot_dimension_numbers<[1], [0], [0], [1], [0, 0, 1, 1], [], []>} : vector<2x32xbf16>, vector<32x128xbf16>, vector<2x128xf32> -> vector<2x128xf32>
    %152 = arith.addf %149, %151 : vector<2x128xf32>
    %153 = arith.negf %152 : vector<2x128xf32>
    %154 = math.exp %153 : vector<2x128xf32>
    %cst_34 = arith.constant 1.000000e+00 : f32
    %155 = vector.broadcast %cst_34 : f32 to vector<2x128xf32>
    %156 = arith.addf %155, %154 : vector<2x128xf32>
    %157 = arith.divf %155, %156 : vector<2x128xf32>
    %158 = math.tanh %152 : vector<2x128xf32>
    %159 = vector.extract_strided_slice %157 {offsets = [0, 0], sizes = [2, 32], strides = [1, 1]} : vector<2x128xf32> to vector<2x32xf32>
    %160 = vector.extract_strided_slice %157 {offsets = [0, 32], sizes = [2, 32], strides = [1, 1]} : vector<2x128xf32> to vector<2x32xf32>
    %161 = vector.extract_strided_slice %158 {offsets = [0, 64], sizes = [2, 32], strides = [1, 1]} : vector<2x128xf32> to vector<2x32xf32>
    %162 = vector.extract_strided_slice %157 {offsets = [0, 96], sizes = [2, 32], strides = [1, 1]} : vector<2x128xf32> to vector<2x32xf32>
    %163 = arith.mulf %160, %145 : vector<2x32xf32>
    %164 = arith.mulf %159, %161 : vector<2x32xf32>
    %165 = arith.addf %163, %164 : vector<2x32xf32>
    %166 = math.tanh %165 : vector<2x32xf32>
    %167 = arith.mulf %162, %166 : vector<2x32xf32>
    %c14 = arith.constant 14 : index
    %c0_35 = arith.constant 0 : index
    %168 = vector.load %arg11[%c14, %c0_35] : memref<16x32xf32, #tpu.memory_space<vmem>>, vector<2x32xf32>
    tpu.vector_store %arg11[%c14, %c0_35], %167 {strides = array<i32>} : memref<16x32xf32, #tpu.memory_space<vmem>>, vector<2x32xf32>,
    %c0_36 = arith.constant 0 : index
    %c0_37 = arith.constant 0 : index
    %169 = vector.load %arg9[%c0_36, %c0_37] : memref<2x32xf32, #tpu.memory_space<vmem>>, vector<2x32xf32>
    tpu.vector_store %arg9[%c0_36, %c0_37], %167 {strides = array<i32>} : memref<2x32xf32, #tpu.memory_space<vmem>>, vector<2x32xf32>,
    %c0_38 = arith.constant 0 : index
    %c0_39 = arith.constant 0 : index
    %170 = vector.load %arg10[%c0_38, %c0_39] : memref<2x32xf32, #tpu.memory_space<vmem>>, vector<2x32xf32>
    tpu.vector_store %arg10[%c0_38, %c0_39], %165 {strides = array<i32>} : memref<2x32xf32, #tpu.memory_space<vmem>>, vector<2x32xf32>,
    %c0_40 = arith.constant 0 : index
    %c0_41 = arith.constant 0 : index
    %171 = vector.load %arg11[%c0_40, %c0_41] : memref<16x32xf32, #tpu.memory_space<vmem>>, vector<16x32xf32>
    %c0_42 = arith.constant 0 : index
    %c0_43 = arith.constant 0 : index
    %172 = vector.load %arg6[%c0_42, %c0_43] : memref<32x16xf32, #tpu.memory_space<vmem>>, vector<32x16xf32>
    %cst_44 = arith.constant dense<0.000000e+00> : vector<16x16xf32>
    %173 = tpu.matmul %171, %172, %cst_44 {dimension_numbers = #tpu.dot_dimension_numbers<[1], [0], [0], [1], [0, 0, 1, 1], [], []>} : vector<16x32xf32>, vector<32x16xf32>, vector<16x16xf32> -> vector<16x16xf32>
    %c0_45 = arith.constant 0 : index
    %c0_46 = arith.constant 0 : index
    %174 = vector.load %arg7[%c0_45, %c0_46] : memref<1x16xf32, #tpu.memory_space<vmem>>, vector<1x16xf32>
    %175 = vector.broadcast %174 : vector<1x16xf32> to vector<16x16xf32>
    %176 = arith.addf %173, %175 : vector<16x16xf32>
    %c0_47 = arith.constant 0 : index
    %c0_48 = arith.constant 0 : index
    %177 = vector.load %arg8[%c0_47, %c0_48] : memref<16x16xf32, #tpu.memory_space<vmem>>, vector<16x16xf32>
    tpu.vector_store %arg8[%c0_47, %c0_48], %176 {strides = array<i32>} : memref<16x16xf32, #tpu.memory_space<vmem>>, vector<16x16xf32>,
    return
  }
}

</mosaic_0001>

<llo_original>
// kernel: tpu_custom_call.1
$region0: #{tpu_custom_call.1}
  #allocation0 [shape = 'u32[]', space=smem, size = 0x4, offset = 0x4, fixed_abs, tag = 'smem constant byte address 0x4 - core index']
  #allocation1 [shape = 'u32[144,128]{1,0:T(1,128)}', space=vmem, size = 0x12000, scoped, tag = 'internal scratch']
  #allocation2 [shape = 'f32[16,32]{1,0:T(8,128)}', space=vmem, size = 0x2000, scoped, tag = 'scratch operand']
  %s0 = inlined_call_operand.vmem [shape: bf16[16,8], index: 0, kind: input, shape index: {}]
  %s1 = inlined_call_operand.vmem [shape: f32[2,32], index: 1, kind: input, shape index: {}]
  %s2 = inlined_call_operand.vmem [shape: f32[2,32], index: 2, kind: input, shape index: {}]
  %s3 = inlined_call_operand.vmem [shape: bf16[8,128], index: 3, kind: input, shape index: {}]
  %s4 = inlined_call_operand.vmem [shape: bf16[32,128], index: 4, kind: input, shape index: {}]
  %s5 = inlined_call_operand.vmem [shape: f32[1,128], index: 5, kind: input, shape index: {}]
  %s6 = inlined_call_operand.vmem [shape: f32[32,16], index: 6, kind: input, shape index: {}]
  %s7 = inlined_call_operand.vmem [shape: f32[1,16], index: 7, kind: input, shape index: {}]
  %s8 = inlined_call_operand.hbm [shape: f32[16,16], index: 8, kind: output, shape index: {0}]
  %s9 = inlined_call_operand.hbm [shape: f32[2,32], index: 9, kind: output, shape index: {1}]
  %s10 = inlined_call_operand.hbm [shape: f32[2,32], index: 10, kind: output, shape index: {2}]
  %11 = xla_tuple %s8, %s9, %s10
  %s12 = sld [smem:[#allocation0]]
  $region58: #{tpu_custom_call.1} parent=0
    _
  %s14 = ssub.s32 1, %s12
  %s15 = scalar_select 0, %s14, %s12
  $region1: #{tpu_custom_call.1} parent=0
    #allocation3 [shape = 'u8[8192]{0}', space=vmem, size = 0x2000, scoped, tag = 'output window, operand 0, single buffered']
    #allocation4 [shape = 's32[1]{0}', space=sflag, size = 0x4, scoped, tag = 'scoped memory for tpu_custom_call.1']
    #allocation5 [shape = 'u8[1024]{0}', space=vmem, size = 0x400, scoped, tag = 'output window, operand 1, single buffered']
    #allocation6 [shape = 's32[1]{0}', space=sflag, size = 0x4, scoped, tag = 'scoped memory for tpu_custom_call.1']
    #allocation7 [shape = 'u8[1024]{0}', space=vmem, size = 0x400, scoped, tag = 'output window, operand 2, single buffered']
    %16 = vsyncpa [#allocation4], 0
    %17 = vsyncpa [#allocation6], 0
    // Predicated region
    $region2: #{tpu_custom_call.1} parent=1 // pred_check
      _
    $region3: #{tpu_custom_call.1} parent=1 // pred_check_branch
      %19 = sbr.rel (0) target = $region5
    $region4: #{tpu_custom_call.1} parent=1 // pred_region
      _
    $region5: #{tpu_custom_call.1} parent=1 // pred_fallthru
      _
    // Predicated region
    $region6: #{tpu_custom_call.1} parent=1 // pred_check
      _
    $region7: #{tpu_custom_call.1} parent=1 // pred_check_branch
      %21 = sbr.rel (0) target = $region9
    $region8: #{tpu_custom_call.1} parent=1 // pred_region
      _
    $region9: #{tpu_custom_call.1} parent=1 // pred_fallthru
      _
    // Predicated region
    $region10: #{tpu_custom_call.1} parent=1 // pred_check
      _
    $region11: #{tpu_custom_call.1} parent=1 // pred_check_branch
      %23 = sbr.rel (0) target = $region13
    $region12: #{tpu_custom_call.1} parent=1 // pred_region
      _
    $region13: #{tpu_custom_call.1} parent=1 // pred_fallthru
      _
    // Predicated region
    $region14: #{tpu_custom_call.1} parent=1 // pred_check
      _
    $region15: #{tpu_custom_call.1} parent=1 // pred_check_branch
      %25 = sbr.rel (0) target = $region17
    $region16: #{tpu_custom_call.1} parent=1 // pred_region
      _
    $region17: #{tpu_custom_call.1} parent=1 // pred_fallthru
      _
    // Predicated region
    $region18: #{tpu_custom_call.1} parent=1 // pred_check
      _
    $region19: #{tpu_custom_call.1} parent=1 // pred_check_branch
      %27 = sbr.rel (0) target = $region21
    $region20: #{tpu_custom_call.1} parent=1 // pred_region
      _
    $region21: #{tpu_custom_call.1} parent=1 // pred_fallthru
      _
    // Predicated region
    $region22: #{tpu_custom_call.1} parent=1 // pred_check
      _
    $region23: #{tpu_custom_call.1} parent=1 // pred_check_branch
      %29 = sbr.rel (0) target = $region25
    $region24: #{tpu_custom_call.1} parent=1 // pred_region
      _
    $region25: #{tpu_custom_call.1} parent=1 // pred_fallthru
      _
    // Predicated region
    $region26: #{tpu_custom_call.1} parent=1 // pred_check
      _
    $region27: #{tpu_custom_call.1} parent=1 // pred_check_branch
      %31 = sbr.rel (0) target = $region29
    $region28: #{tpu_custom_call.1} parent=1 // pred_region
      _
    $region29: #{tpu_custom_call.1} parent=1 // pred_fallthru
      _
    // Predicated region
    $region30: #{tpu_custom_call.1} parent=1 // pred_check
      _
    $region31: #{tpu_custom_call.1} parent=1 // pred_check_branch
      %33 = sbr.rel (0) target = $region33
    $region32: #{tpu_custom_call.1} parent=1 // pred_region
      _
    $region33: #{tpu_custom_call.1} parent=1 // pred_fallthru
      _
    %v35 = vld [vmem:[%s0] sm:$0xf]
    %v36 = vld [vmem:[%s0 + $0x4] sm:$0xf]
    %v37 = vld [vmem:[%s3] sm:$0xf]
    %v38 = vld [vmem:[%s5] sm:$0x1]
    %v40 = vlaneseq
    %v41 = vshrl.u32 %v40, 7
    %v42 = vsub.s32 0, %v41
    %v43 = vrot.slane %v38, %v42
    %v47 = vunpack.c.l.b16 %v35
    %v48 = vunpack.c.l.b16 %v36
    %v49 = vpack.c.b16 %v48, %v47
    %vm50 = vcmask 64512
    %v52 = vsel %vm50, %v49, 0
    %vm54 = vcmask 1043456
    %v56 = vsel %vm54, %v37, 0
    %58 = vmatprep.subr.bf16.mxu0 0
    %59 = vmatpush1.bf16.msra.mxu0 %v56
    %60 = vmatprep.subr.bf16.mxu0 0
    %61 = vmatpush1.bf16.msra.mxu0 0
    %62 = vmatprep.subr.bf16.mxu0 0
    %63 = vmatpush1.bf16.msra.mxu0 0
    %64 = vmatprep.subr.bf16.mxu0 0
    %65 = vmatpush1.bf16.msra.mxu0 0
    %66 = vmatprep.subr.bf16.mxu0 0
    %67 = vmatpush1.bf16.msra.mxu0 0
    %68 = vmatprep.subr.bf16.mxu0 0
    %69 = vmatpush1.bf16.msra.mxu0 0
    %70 = vmatprep.subr.bf16.mxu0 0
    %71 = vmatpush1.bf16.msra.mxu0 0
    %72 = vmatprep.subr.bf16.mxu0 0
    %73 = vmatpush1.bf16.msra.mxu0 0
    %74 = vmatprep.subr.bf16.mxu0 0
    %75 = vmatpush1.bf16.msra.mxu0 0
    %76 = vmatprep.subr.bf16.mxu0 0
    %77 = vmatpush1.bf16.msra.mxu0 0
    %78 = vmatprep.subr.bf16.mxu0 0
    %79 = vmatpush1.bf16.msra.mxu0 0
    %80 = vmatprep.subr.bf16.mxu0 0
    %81 = vmatpush1.bf16.msra.mxu0 0
    %82 = vmatprep.subr.bf16.mxu0 0
    %83 = vmatpush1.bf16.msra.mxu0 0
    %84 = vmatprep.subr.bf16.mxu0 0
    %85 = vmatpush1.bf16.msra.mxu0 0
    %86 = vmatprep.subr.bf16.mxu0 0
    %87 = vmatpush1.bf16.msra.mxu0 0
    %88 = vmatprep.subr.bf16.mxu0 0
    %89 = vmatpush1.bf16.msra.mxu0 0
    %90 = vmatprep.mubr.bf16.mxu0 0
    %91 = vmatmul.mubr.bf16.gmra.mrb[0].mxu0 %v52
    %v92 = vpop.f32.mrb[0].mxu0
    %v93 = vadd.f32 %v43, %v92
    %v94 = vpop.f32.mrb[0].mxu0
    %v95 = vpop.f32.mrb[0].mxu0
    %v96 = vadd.f32 %v43, %v95
    %v97 = vpop.f32.mrb[0].mxu0
    %98 = vdwg.mxu0
    %v99 = vld [vmem:[%s4] sm:$0xf]
    %v100 = vld [vmem:[%s4 + $0x4] sm:$0xf]
    %v101 = vld [vmem:[%s4 + $0x8] sm:$0xf]
    %v102 = vld [vmem:[%s4 + $0xc] sm:$0xf]
    %v103 = vld [vmem:[%s1] sm:$0x3]
    %v104 = vld [vmem:[%s2] sm:$0x3]
    %v105 = vpack.c.bf16 %v103, %v103
    %v110 = vunpack.c.l.b16 %v99
    %v111 = vunpack.c.l.b16 %v100
    %v112 = vunpack.c.l.b16 %v101
    %v113 = vunpack.c.l.b16 %v102
    %v114 = vpack.c.b16 %v111, %v110
    %v115 = vpack.c.b16 %v113, %v112
    %vm118 = vcmask 261120
    %v120 = vsel %vm118, %v105, 0
    %122 = vmatprep.subr.bf16.mxu0 0
    %123 = vmatpush1.bf16.msra.mxu0 %v114
    %124 = vmatprep.subr.bf16.mxu0 0
    %125 = vmatpush1.bf16.msra.mxu0 %v115
    %126 = vmatprep.subr.bf16.mxu0 0
    %127 = vmatpush1.bf16.msra.mxu0 0
    %128 = vmatprep.subr.bf16.mxu0 0
    %129 = vmatpush1.bf16.msra.mxu0 0
    %130 = vmatprep.subr.bf16.mxu0 0
    %131 = vmatpush1.bf16.msra.mxu0 0
    %132 = vmatprep.subr.bf16.mxu0 0
    %133 = vmatpush1.bf16.msra.mxu0 0
    %134 = vmatprep.subr.bf16.mxu0 0
    %135 = vmatpush1.bf16.msra.mxu0 0
    %136 = vmatprep.subr.bf16.mxu0 0
    %137 = vmatpush1.bf16.msra.mxu0 0
    %138 = vmatprep.subr.bf16.mxu0 0
    %139 = vmatpush1.bf16.msra.mxu0 0
    %140 = vmatprep.subr.bf16.mxu0 0
    %141 = vmatpush1.bf16.msra.mxu0 0
    %142 = vmatprep.subr.bf16.mxu0 0
    %143 = vmatpush1.bf16.msra.mxu0 0
    %144 = vmatprep.subr.bf16.mxu0 0
    %145 = vmatpush1.bf16.msra.mxu0 0
    %146 = vmatprep.subr.bf16.mxu0 0
    %147 = vmatpush1.bf16.msra.mxu0 0
    %148 = vmatprep.subr.bf16.mxu0 0
    %149 = vmatpush1.bf16.msra.mxu0 0
    %150 = vmatprep.subr.bf16.mxu0 0
    %151 = vmatpush1.bf16.msra.mxu0 0
    %152 = vmatprep.subr.bf16.mxu0 0
    %153 = vmatpush1.bf16.msra.mxu0 0
    %154 = vmatprep.mubr.bf16.mxu0 0
    %155 = vmatmul.mubr.bf16.gmra.mrb[0].mxu0 %v120
    %v156 = vpop.f32.mrb[0].mxu0
    %v157 = vadd.f32 0.0, %v156
    %v158 = vpop.f32.mrb[0].mxu0
    %v159 = vpop.f32.mrb[0].mxu0
    %v160 = vpop.f32.mrb[0].mxu0
    %161 = vdwg.mxu0
    %v162 = vadd.f32 %v93, %v157
    %v163 = vxor.u32 %v162, 2147483648
    %v164 = vmul.f32 %v163, 1.442695
    %v165 = vpow.pop %v164
    %v166 = vadd.f32 %v165, 1.0
    %v167 = vrcp.pop %v166
    %v168 = vmul.f32 1.0, %v167
    %v169 = vtanh.pop %v162
    %171 = vrot.lane.b32.xlu0 %v104, 32
    %v172 = vpop.permute.xlu0 %171
    %v174 = vmul.f32 %v168, %v172
    %176 = vrot.lane.b32.xlu0 %v169, 64
    %v177 = vpop.permute.xlu0 %176
    %v179 = vmul.f32 %v168, %v177
    %181 = vrot.lane.b32.xlu0 %v179, 32
    %v182 = vpop.permute.xlu0 %181
    %v184 = vadd.f32 %v174, %v182
    %v185 = vtanh.pop %v184
    %187 = vrot.lane.b32.xlu0 %v185, 64
    %v188 = vpop.permute.xlu0 %187
    %v190 = vmul.f32 %v168, %v188
    %192 = vrot.lane.b32.xlu0 %v190, 32
    %v193 = vpop.permute.xlu0 %192
    %vm195 = vcmask 254976
    %196 = vst.msk [vmem:[#allocation2] sm:$0x3] %vm195, %v193
    %v197 = vpack.c.bf16 %v190, %v190
    %199 = vrot.lane.b32.xlu0 %v197, 32
    %v200 = vpop.permute.xlu0 %199
    %v202 = vsel %vm118, %v200, 0
    %204 = vmatprep.subr.bf16.mxu0 0
    %205 = vmatpush1.bf16.msra.mxu0 %v114
    %206 = vmatprep.subr.bf16.mxu0 0
    %207 = vmatpush1.bf16.msra.mxu0 %v115
    %208 = vmatprep.subr.bf16.mxu0 0
    %209 = vmatpush1.bf16.msra.mxu0 0
    %210 = vmatprep.subr.bf16.mxu0 0
    %211 = vmatpush1.bf16.msra.mxu0 0
    %212 = vmatprep.subr.bf16.mxu0 0
    %213 = vmatpush1.bf16.msra.mxu0 0
    %214 = vmatprep.subr.bf16.mxu0 0
    %215 = vmatpush1.bf16.msra.mxu0 0
    %216 = vmatprep.subr.bf16.mxu0 0
    %217 = vmatpush1.bf16.msra.mxu0 0
    %218 = vmatprep.subr.bf16.mxu0 0
    %219 = vmatpush1.bf16.msra.mxu0 0
    %220 = vmatprep.subr.bf16.mxu0 0
    %221 = vmatpush1.bf16.msra.mxu0 0
    %222 = vmatprep.subr.bf16.mxu0 0
    %223 = vmatpush1.bf16.msra.mxu0 0
    %224 = vmatprep.subr.bf16.mxu0 0
    %225 = vmatpush1.bf16.msra.mxu0 0
    %226 = vmatprep.subr.bf16.mxu0 0
    %227 = vmatpush1.bf16.msra.mxu0 0
    %228 = vmatprep.subr.bf16.mxu0 0
    %229 = vmatpush1.bf16.msra.mxu0 0
    %230 = vmatprep.subr.bf16.mxu0 0
    %231 = vmatpush1.bf16.msra.mxu0 0
    %232 = vmatprep.subr.bf16.mxu0 0
    %233 = vmatpush1.bf16.msra.mxu0 0
    %234 = vmatprep.subr.bf16.mxu0 0
    %235 = vmatpush1.bf16.msra.mxu0 0
    %236 = vmatprep.mubr.bf16.mxu0 0
    %237 = vmatmul.mubr.bf16.gmra.mrb[0].mxu0 %v202
    %v238 = vpop.f32.mrb[0].mxu0
    %v239 = vadd.f32 0.0, %v238
    %v240 = vpop.f32.mrb[0].mxu0
    %v241 = vpop.f32.mrb[0].mxu0
    %v242 = vpop.f32.mrb[0].mxu0
    %243 = vdwg.mxu0
    %v245 = vrot.slane %v239, 6
    %v247 = vadd.f32 %v93, %v245
    %v248 = vxor.u32 %v247, 2147483648
    %v249 = vmul.f32 %v248, 1.442695
    %v250 = vpow.pop %v249
    %v251 = vadd.f32 %v250, 1.0
    %v252 = vrcp.pop %v251
    %v253 = vmul.f32 1.0, %v252
    %v254 = vtanh.pop %v247
    %v256 = vrot.slane %v184, 6
    %v258 = vmul.f32 %v253, %v256
    %260 = vrot.lane.b32.xlu0 %v254, 64
    %v261 = vpop.permute.xlu0 %260
    %v263 = vmul.f32 %v253, %v261
    %265 = vrot.lane.b32.xlu0 %v263, 32
    %v266 = vpop.permute.xlu0 %265
    %v268 = vadd.f32 %v258, %v266
    %v269 = vtanh.pop %v268
    %271 = vrot.lane.b32.xlu0 %v269, 64
    %v272 = vpop.permute.xlu0 %271
    %v274 = vmul.f32 %v253, %v272
    %276 = vrot.lane.b32.xlu0 %v274, 32
    %v277 = vpop.permute.xlu0 %276
    %vm279 = vcmask 257026
    %280 = vst.msk [vmem:[#allocation2] sm:$0xc] %vm279, %v277
    %v281 = vpack.c.bf16 %v274, %v274
    %v283 = vrot.slane %v281, 1
    %284 = vrot.lane.b32.xlu0 %v283, 32
    %v285 = vpop.permute.xlu0 %284
    %v287 = vsel %vm118, %v285, 0
    %289 = vmatprep.subr.bf16.mxu0 0
    %290 = vmatpush1.bf16.msra.mxu0 %v114
    %291 = vmatprep.subr.bf16.mxu0 0
    %292 = vmatpush1.bf16.msra.mxu0 %v115
    %293 = vmatprep.subr.bf16.mxu0 0
    %294 = vmatpush1.bf16.msra.mxu0 0
    %295 = vmatprep.subr.bf16.mxu0 0
    %296 = vmatpush1.bf16.msra.mxu0 0
    %297 = vmatprep.subr.bf16.mxu0 0
    %298 = vmatpush1.bf16.msra.mxu0 0
    %299 = vmatprep.subr.bf16.mxu0 0
    %300 = vmatpush1.bf16.msra.mxu0 0
    %301 = vmatprep.subr.bf16.mxu0 0
    %302 = vmatpush1.bf16.msra.mxu0 0
    %303 = vmatprep.subr.bf16.mxu0 0
    %304 = vmatpush1.bf16.msra.mxu0 0
    %305 = vmatprep.subr.bf16.mxu0 0
    %306 = vmatpush1.bf16.msra.mxu0 0
    %307 = vmatprep.subr.bf16.mxu0 0
    %308 = vmatpush1.bf16.msra.mxu0 0
    %309 = vmatprep.subr.bf16.mxu0 0
    %310 = vmatpush1.bf16.msra.mxu0 0
    %311 = vmatprep.subr.bf16.mxu0 0
    %312 = vmatpush1.bf16.msra.mxu0 0
    %313 = vmatprep.subr.bf16.mxu0 0
    %314 = vmatpush1.bf16.msra.mxu0 0
    %315 = vmatprep.subr.bf16.mxu0 0
    %316 = vmatpush1.bf16.msra.mxu0 0
    %317 = vmatprep.subr.bf16.mxu0 0
    %318 = vmatpush1.bf16.msra.mxu0 0
    %319 = vmatprep.subr.bf16.mxu0 0
    %320 = vmatpush1.bf16.msra.mxu0 0
    %321 = vmatprep.mubr.bf16.mxu0 0
    %322 = vmatmul.mubr.bf16.gmra.mrb[0].mxu0 %v287
    %v323 = vpop.f32.mrb[0].mxu0
    %v324 = vadd.f32 0.0, %v323
    %v325 = vpop.f32.mrb[0].mxu0
    %v326 = vpop.f32.mrb[0].mxu0
    %v327 = vpop.f32.mrb[0].mxu0
    %328 = vdwg.mxu0
    %v330 = vrot.slane %v324, 4
    %v332 = vadd.f32 %v93, %v330
    %v333 = vxor.u32 %v332, 2147483648
    %v334 = vmul.f32 %v333, 1.442695
    %v335 = vpow.pop %v334
    %v336 = vadd.f32 %v335, 1.0
    %v337 = vrcp.pop %v336
    %v338 = vmul.f32 1.0, %v337
    %v339 = vtanh.pop %v332
    %v341 = vrot.slane %v268, 6
    %v343 = vmul.f32 %v338, %v341
    %345 = vrot.lane.b32.xlu0 %v339, 64
    %v346 = vpop.permute.xlu0 %345
    %v348 = vmul.f32 %v338, %v346
    %350 = vrot.lane.b32.xlu0 %v348, 32
    %v351 = vpop.permute.xlu0 %350
    %v353 = vadd.f32 %v343, %v351
    %v354 = vtanh.pop %v353
    %356 = vrot.lane.b32.xlu0 %v354, 64
    %v357 = vpop.permute.xlu0 %356
    %v359 = vmul.f32 %v338, %v357
    %361 = vrot.lane.b32.xlu0 %v359, 32
    %v362 = vpop.permute.xlu0 %361
    %vm364 = vcmask 259076
    %365 = vst.msk [vmem:[#allocation2] sm:$0x30] %vm364, %v362
    %v366 = vpack.c.bf16 %v359, %v359
    %v368 = vrot.slane %v366, 2
    %369 = vrot.lane.b32.xlu0 %v368, 32
    %v370 = vpop.permute.xlu0 %369
    %v372 = vsel %vm118, %v370, 0
    %374 = vmatprep.subr.bf16.mxu0 0
    %375 = vmatpush1.bf16.msra.mxu0 %v114
    %376 = vmatprep.subr.bf16.mxu0 0
    %377 = vmatpush1.bf16.msra.mxu0 %v115
    %378 = vmatprep.subr.bf16.mxu0 0
    %379 = vmatpush1.bf16.msra.mxu0 0
    %380 = vmatprep.subr.bf16.mxu0 0
    %381 = vmatpush1.bf16.msra.mxu0 0
    %382 = vmatprep.subr.bf16.mxu0 0
    %383 = vmatpush1.bf16.msra.mxu0 0
    %384 = vmatprep.subr.bf16.mxu0 0
    %385 = vmatpush1.bf16.msra.mxu0 0
    %386 = vmatprep.subr.bf16.mxu0 0
    %387 = vmatpush1.bf16.msra.mxu0 0
    %388 = vmatprep.subr.bf16.mxu0 0
    %389 = vmatpush1.bf16.msra.mxu0 0
    %390 = vmatprep.subr.bf16.mxu0 0
    %391 = vmatpush1.bf16.msra.mxu0 0
    %392 = vmatprep.subr.bf16.mxu0 0
    %393 = vmatpush1.bf16.msra.mxu0 0
    %394 = vmatprep.subr.bf16.mxu0 0
    %395 = vmatpush1.bf16.msra.mxu0 0
    %396 = vmatprep.subr.bf16.mxu0 0
    %397 = vmatpush1.bf16.msra.mxu0 0
    %398 = vmatprep.subr.bf16.mxu0 0
    %399 = vmatpush1.bf16.msra.mxu0 0
    %400 = vmatprep.subr.bf16.mxu0 0
    %401 = vmatpush1.bf16.msra.mxu0 0
    %402 = vmatprep.subr.bf16.mxu0 0
    %403 = vmatpush1.bf16.msra.mxu0 0
    %404 = vmatprep.subr.bf16.mxu0 0
    %405 = vmatpush1.bf16.msra.mxu0 0
    %406 = vmatprep.mubr.bf16.mxu0 0
    %407 = vmatmul.mubr.bf16.gmra.mrb[0].mxu0 %v372
    %v408 = vpop.f32.mrb[0].mxu0
    %v409 = vadd.f32 0.0, %v408
    %v410 = vpop.f32.mrb[0].mxu0
    %v411 = vpop.f32.mrb[0].mxu0
    %v412 = vpop.f32.mrb[0].mxu0
    %413 = vdwg.mxu0
    %v415 = vrot.slane %v409, 2
    %v417 = vadd.f32 %v93, %v415
    %v418 = vxor.u32 %v417, 2147483648
    %v419 = vmul.f32 %v418, 1.442695
    %v420 = vpow.pop %v419
    %v421 = vadd.f32 %v420, 1.0
    %v422 = vrcp.pop %v421
    %v423 = vmul.f32 1.0, %v422
    %v424 = vtanh.pop %v417
    %v426 = vrot.slane %v353, 6
    %v428 = vmul.f32 %v423, %v426
    %430 = vrot.lane.b32.xlu0 %v424, 64
    %v431 = vpop.permute.xlu0 %430
    %v433 = vmul.f32 %v423, %v431
    %435 = vrot.lane.b32.xlu0 %v433, 32
    %v436 = vpop.permute.xlu0 %435
    %v438 = vadd.f32 %v428, %v436
    %v439 = vtanh.pop %v438
    %441 = vrot.lane.b32.xlu0 %v439, 64
    %v442 = vpop.permute.xlu0 %441
    %v444 = vmul.f32 %v423, %v442
    %446 = vrot.lane.b32.xlu0 %v444, 32
    %v447 = vpop.permute.xlu0 %446
    %vm449 = vcmask 261126
    %450 = vst.msk [vmem:[#allocation2] sm:$0xc0] %vm449, %v447
    %v451 = vpack.c.bf16 %v444, %v444
    %v453 = vrot.slane %v451, 3
    %454 = vrot.lane.b32.xlu0 %v453, 32
    %v455 = vpop.permute.xlu0 %454
    %v457 = vsel %vm118, %v455, 0
    %459 = vmatprep.subr.bf16.mxu0 0
    %460 = vmatpush1.bf16.msra.mxu0 %v114
    %461 = vmatprep.subr.bf16.mxu0 0
    %462 = vmatpush1.bf16.msra.mxu0 %v115
    %463 = vmatprep.subr.bf16.mxu0 0
    %464 = vmatpush1.bf16.msra.mxu0 0
    %465 = vmatprep.subr.bf16.mxu0 0
    %466 = vmatpush1.bf16.msra.mxu0 0
    %467 = vmatprep.subr.bf16.mxu0 0
    %468 = vmatpush1.bf16.msra.mxu0 0
    %469 = vmatprep.subr.bf16.mxu0 0
    %470 = vmatpush1.bf16.msra.mxu0 0
    %471 = vmatprep.subr.bf16.mxu0 0
    %472 = vmatpush1.bf16.msra.mxu0 0
    %473 = vmatprep.subr.bf16.mxu0 0
    %474 = vmatpush1.bf16.msra.mxu0 0
    %475 = vmatprep.subr.bf16.mxu0 0
    %476 = vmatpush1.bf16.msra.mxu0 0
    %477 = vmatprep.subr.bf16.mxu0 0
    %478 = vmatpush1.bf16.msra.mxu0 0
    %479 = vmatprep.subr.bf16.mxu0 0
    %480 = vmatpush1.bf16.msra.mxu0 0
    %481 = vmatprep.subr.bf16.mxu0 0
    %482 = vmatpush1.bf16.msra.mxu0 0
    %483 = vmatprep.subr.bf16.mxu0 0
    %484 = vmatpush1.bf16.msra.mxu0 0
    %485 = vmatprep.subr.bf16.mxu0 0
    %486 = vmatpush1.bf16.msra.mxu0 0
    %487 = vmatprep.subr.bf16.mxu0 0
    %488 = vmatpush1.bf16.msra.mxu0 0
    %489 = vmatprep.subr.bf16.mxu0 0
    %490 = vmatpush1.bf16.msra.mxu0 0
    %491 = vmatprep.mubr.bf16.mxu0 0
    %492 = vmatmul.mubr.bf16.gmra.mrb[0].mxu0 %v457
    %v493 = vpop.f32.mrb[0].mxu0
    %v494 = vadd.f32 0.0, %v493
    %v495 = vpop.f32.mrb[0].mxu0
    %v496 = vpop.f32.mrb[0].mxu0
    %v497 = vpop.f32.mrb[0].mxu0
    %498 = vdwg.mxu0
    %v499 = vadd.f32 %v96, %v494
    %v500 = vxor.u32 %v499, 2147483648
    %v501 = vmul.f32 %v500, 1.442695
    %v502 = vpow.pop %v501
    %v503 = vadd.f32 %v502, 1.0
    %v504 = vrcp.pop %v503
    %v505 = vmul.f32 1.0, %v504
    %v506 = vtanh.pop %v499
    %v508 = vrot.slane %v438, 6
    %v510 = vmul.f32 %v505, %v508
    %512 = vrot.lane.b32.xlu0 %v506, 64
    %v513 = vpop.permute.xlu0 %512
    %v515 = vmul.f32 %v505, %v513
    %517 = vrot.lane.b32.xlu0 %v515, 32
    %v518 = vpop.permute.xlu0 %517
    %v520 = vadd.f32 %v510, %v518
    %v521 = vtanh.pop %v520
    %523 = vrot.lane.b32.xlu0 %v521, 64
    %v524 = vpop.permute.xlu0 %523
    %v526 = vmul.f32 %v505, %v524
    %528 = vrot.lane.b32.xlu0 %v526, 32
    %v529 = vpop.permute.xlu0 %528
    %531 = vst.msk [vmem:[#allocation2 + $0x8] sm:$0x3] %vm195, %v529
    %v532 = vpack.c.bf16 %v526, %v526
    %534 = vrot.lane.b32.xlu0 %v532, 32
    %v535 = vpop.permute.xlu0 %534
    %v537 = vsel %vm118, %v535, 0
    %539 = vmatprep.subr.bf16.mxu0 0
    %540 = vmatpush1.bf16.msra.mxu0 %v114
    %541 = vmatprep.subr.bf16.mxu0 0
    %542 = vmatpush1.bf16.msra.mxu0 %v115
    %543 = vmatprep.subr.bf16.mxu0 0
    %544 = vmatpush1.bf16.msra.mxu0 0
    %545 = vmatprep.subr.bf16.mxu0 0
    %546 = vmatpush1.bf16.msra.mxu0 0
    %547 = vmatprep.subr.bf16.mxu0 0
    %548 = vmatpush1.bf16.msra.mxu0 0
    %549 = vmatprep.subr.bf16.mxu0 0
    %550 = vmatpush1.bf16.msra.mxu0 0
    %551 = vmatprep.subr.bf16.mxu0 0
    %552 = vmatpush1.bf16.msra.mxu0 0
    %553 = vmatprep.subr.bf16.mxu0 0
    %554 = vmatpush1.bf16.msra.mxu0 0
    %555 = vmatprep.subr.bf16.mxu0 0
    %556 = vmatpush1.bf16.msra.mxu0 0
    %557 = vmatprep.subr.bf16.mxu0 0
    %558 = vmatpush1.bf16.msra.mxu0 0
    %559 = vmatprep.subr.bf16.mxu0 0
    %560 = vmatpush1.bf16.msra.mxu0 0
    %561 = vmatprep.subr.bf16.mxu0 0
    %562 = vmatpush1.bf16.msra.mxu0 0
    %563 = vmatprep.subr.bf16.mxu0 0
    %564 = vmatpush1.bf16.msra.mxu0 0
    %565 = vmatprep.subr.bf16.mxu0 0
    %566 = vmatpush1.bf16.msra.mxu0 0
    %567 = vmatprep.subr.bf16.mxu0 0
    %568 = vmatpush1.bf16.msra.mxu0 0
    %569 = vmatprep.subr.bf16.mxu0 0
    %570 = vmatpush1.bf16.msra.mxu0 0
    %571 = vmatprep.mubr.bf16.mxu0 0
    %572 = vmatmul.mubr.bf16.gmra.mrb[0].mxu0 %v537
    %v573 = vpop.f32.mrb[0].mxu0
    %v574 = vadd.f32 0.0, %v573
    %v575 = vpop.f32.mrb[0].mxu0
    %v576 = vpop.f32.mrb[0].mxu0
    %v577 = vpop.f32.mrb[0].mxu0
    %578 = vdwg.mxu0
    %v580 = vrot.slane %v574, 6
    %v582 = vadd.f32 %v96, %v580
    %v583 = vxor.u32 %v582, 2147483648
    %v584 = vmul.f32 %v583, 1.442695
    %v585 = vpow.pop %v584
    %v586 = vadd.f32 %v585, 1.0
    %v587 = vrcp.pop %v586
    %v588 = vmul.f32 1.0, %v587
    %v589 = vtanh.pop %v582
    %v591 = vrot.slane %v520, 6
    %v593 = vmul.f32 %v588, %v591
    %595 = vrot.lane.b32.xlu0 %v589, 64
    %v596 = vpop.permute.xlu0 %595
    %v598 = vmul.f32 %v588, %v596
    %600 = vrot.lane.b32.xlu0 %v598, 32
    %v601 = vpop.permute.xlu0 %600
    %v603 = vadd.f32 %v593, %v601
    %v604 = vtanh.pop %v603
    %606 = vrot.lane.b32.xlu0 %v604, 64
    %v607 = vpop.permute.xlu0 %606
    %v609 = vmul.f32 %v588, %v607
    %611 = vrot.lane.b32.xlu0 %v609, 32
    %v612 = vpop.permute.xlu0 %611
    %614 = vst.msk [vmem:[#allocation2 + $0x8] sm:$0xc] %vm279, %v612
    %v615 = vpack.c.bf16 %v609, %v609
    %v617 = vrot.slane %v615, 1
    %618 = vrot.lane.b32.xlu0 %v617, 32
    %v619 = vpop.permute.xlu0 %618
    %v621 = vsel %vm118, %v619, 0
    %623 = vmatprep.subr.bf16.mxu0 0
    %624 = vmatpush1.bf16.msra.mxu0 %v114
    %625 = vmatprep.subr.bf16.mxu0 0
    %626 = vmatpush1.bf16.msra.mxu0 %v115
    %627 = vmatprep.subr.bf16.mxu0 0
    %628 = vmatpush1.bf16.msra.mxu0 0
    %629 = vmatprep.subr.bf16.mxu0 0
    %630 = vmatpush1.bf16.msra.mxu0 0
    %631 = vmatprep.subr.bf16.mxu0 0
    %632 = vmatpush1.bf16.msra.mxu0 0
    %633 = vmatprep.subr.bf16.mxu0 0
    %634 = vmatpush1.bf16.msra.mxu0 0
    %635 = vmatprep.subr.bf16.mxu0 0
    %636 = vmatpush1.bf16.msra.mxu0 0
    %637 = vmatprep.subr.bf16.mxu0 0
    %638 = vmatpush1.bf16.msra.mxu0 0
    %639 = vmatprep.subr.bf16.mxu0 0
    %640 = vmatpush1.bf16.msra.mxu0 0
    %641 = vmatprep.subr.bf16.mxu0 0
    %642 = vmatpush1.bf16.msra.mxu0 0
    %643 = vmatprep.subr.bf16.mxu0 0
    %644 = vmatpush1.bf16.msra.mxu0 0
    %645 = vmatprep.subr.bf16.mxu0 0
    %646 = vmatpush1.bf16.msra.mxu0 0
    %647 = vmatprep.subr.bf16.mxu0 0
    %648 = vmatpush1.bf16.msra.mxu0 0
    %649 = vmatprep.subr.bf16.mxu0 0
    %650 = vmatpush1.bf16.msra.mxu0 0
    %651 = vmatprep.subr.bf16.mxu0 0
    %652 = vmatpush1.bf16.msra.mxu0 0
    %653 = vmatprep.subr.bf16.mxu0 0
    %654 = vmatpush1.bf16.msra.mxu0 0
    %655 = vmatprep.mubr.bf16.mxu0 0
    %656 = vmatmul.mubr.bf16.gmra.mrb[0].mxu0 %v621
    %v657 = vpop.f32.mrb[0].mxu0
    %v658 = vadd.f32 0.0, %v657
    %v659 = vpop.f32.mrb[0].mxu0
    %v660 = vpop.f32.mrb[0].mxu0
    %v661 = vpop.f32.mrb[0].mxu0
    %662 = vdwg.mxu0
    %v664 = vrot.slane %v658, 4
    %v666 = vadd.f32 %v96, %v664
    %v667 = vxor.u32 %v666, 2147483648
    %v668 = vmul.f32 %v667, 1.442695
    %v669 = vpow.pop %v668
    %v670 = vadd.f32 %v669, 1.0
    %v671 = vrcp.pop %v670
    %v672 = vmul.f32 1.0, %v671
    %v673 = vtanh.pop %v666
    %v675 = vrot.slane %v603, 6
    %v677 = vmul.f32 %v672, %v675
    %679 = vrot.lane.b32.xlu0 %v673, 64
    %v680 = vpop.permute.xlu0 %679
    %v682 = vmul.f32 %v672, %v680
    %684 = vrot.lane.b32.xlu0 %v682, 32
    %v685 = vpop.permute.xlu0 %684
    %v687 = vadd.f32 %v677, %v685
    %v688 = vtanh.pop %v687
    %690 = vrot.lane.b32.xlu0 %v688, 64
    %v691 = vpop.permute.xlu0 %690
    %v693 = vmul.f32 %v672, %v691
    %695 = vrot.lane.b32.xlu0 %v693, 32
    %v696 = vpop.permute.xlu0 %695
    %698 = vst.msk [vmem:[#allocation2 + $0x8] sm:$0x30] %vm364, %v696
    %v699 = vpack.c.bf16 %v693, %v693
    %v701 = vrot.slane %v699, 2
    %702 = vrot.lane.b32.xlu0 %v701, 32
    %v703 = vpop.permute.xlu0 %702
    %v705 = vsel %vm118, %v703, 0
    %707 = vmatprep.subr.bf16.mxu0 0
    %708 = vmatpush1.bf16.msra.mxu0 %v114
    %709 = vmatprep.subr.bf16.mxu0 0
    %710 = vmatpush1.bf16.msra.mxu0 %v115
    %711 = vmatprep.subr.bf16.mxu0 0
    %712 = vmatpush1.bf16.msra.mxu0 0
    %713 = vmatprep.subr.bf16.mxu0 0
    %714 = vmatpush1.bf16.msra.mxu0 0
    %715 = vmatprep.subr.bf16.mxu0 0
    %716 = vmatpush1.bf16.msra.mxu0 0
    %717 = vmatprep.subr.bf16.mxu0 0
    %718 = vmatpush1.bf16.msra.mxu0 0
    %719 = vmatprep.subr.bf16.mxu0 0
    %720 = vmatpush1.bf16.msra.mxu0 0
    %721 = vmatprep.subr.bf16.mxu0 0
    %722 = vmatpush1.bf16.msra.mxu0 0
    %723 = vmatprep.subr.bf16.mxu0 0
    %724 = vmatpush1.bf16.msra.mxu0 0
    %725 = vmatprep.subr.bf16.mxu0 0
    %726 = vmatpush1.bf16.msra.mxu0 0
    %727 = vmatprep.subr.bf16.mxu0 0
    %728 = vmatpush1.bf16.msra.mxu0 0
    %729 = vmatprep.subr.bf16.mxu0 0
    %730 = vmatpush1.bf16.msra.mxu0 0
    %731 = vmatprep.subr.bf16.mxu0 0
    %732 = vmatpush1.bf16.msra.mxu0 0
    %733 = vmatprep.subr.bf16.mxu0 0
    %734 = vmatpush1.bf16.msra.mxu0 0
    %735 = vmatprep.subr.bf16.mxu0 0
    %736 = vmatpush1.bf16.msra.mxu0 0
    %737 = vmatprep.subr.bf16.mxu0 0
    %738 = vmatpush1.bf16.msra.mxu0 0
    %739 = vmatprep.mubr.bf16.mxu0 0
    %740 = vmatmul.mubr.bf16.gmra.mrb[0].mxu0 %v705
    %v741 = vpop.f32.mrb[0].mxu0
    %v742 = vadd.f32 0.0, %v741
    %v743 = vpop.f32.mrb[0].mxu0
    %v744 = vpop.f32.mrb[0].mxu0
    %v745 = vpop.f32.mrb[0].mxu0
    %746 = vdwg.mxu0
    %v748 = vrot.slane %v742, 2
    %v750 = vadd.f32 %v96, %v748
    %v751 = vxor.u32 %v750, 2147483648
    %v752 = vmul.f32 %v751, 1.442695
    %v753 = vpow.pop %v752
    %v754 = vadd.f32 %v753, 1.0
    %v755 = vrcp.pop %v754
    %v756 = vmul.f32 1.0, %v755
    %v757 = vtanh.pop %v750
    %v759 = vrot.slane %v687, 6
    %v761 = vmul.f32 %v756, %v759
    %763 = vrot.lane.b32.xlu0 %v757, 64
    %v764 = vpop.permute.xlu0 %763
    %v766 = vmul.f32 %v756, %v764
    %768 = vrot.lane.b32.xlu0 %v766, 32
    %v769 = vpop.permute.xlu0 %768
    %v771 = vadd.f32 %v761, %v769
    %v772 = vtanh.pop %v771
    %774 = vrot.lane.b32.xlu0 %v772, 64
    %v775 = vpop.permute.xlu0 %774
    %v777 = vmul.f32 %v756, %v775
    %779 = vrot.lane.b32.xlu0 %v777, 32
    %v780 = vpop.permute.xlu0 %779
    %782 = vst.msk [vmem:[#allocation2 + $0x8] sm:$0xc0] %vm449, %v780
    %783 = vst.msk [vmem:[#allocation5 - $0x6] sm:$0xc0] %vm449, %v780
    %785 = vrot.lane.b32.xlu0 %v771, 96
    %v786 = vpop.permute.xlu0 %785
    %788 = vst.msk [vmem:[#allocation7 - $0x6] sm:$0xc0] %vm449, %v786
    %v789 = vld [vmem:[#allocation2] sm:$0xff]
    %v790 = vld [vmem:[#allocation2 + $0x8] sm:$0xff]
    %v791 = vld [vmem:[%s6] sm:$0xff]
    %v792 = vld [vmem:[%s6 + $0x8] sm:$0xff]
    %v793 = vld [vmem:[%s6 + $0x10] sm:$0xff]
    %v794 = vld [vmem:[%s6 + $0x18] sm:$0xff]
    %v795 = vld [vmem:[%s7] sm:$0x1]
    %v797 = vlaneseq
    %v798 = vshrl.u32 %v797, 7
    %v799 = vsub.s32 0, %v798
    %v800 = vrot.slane %v795, %v799
    %v803 = vsel %vm118, %v789, 0
    %v806 = vsel %vm118, %v790, 0
    %808 = vmatprep.subr.mxu0 0.0
    %809 = vmatpush1.msra.mxu0 %v791
    %810 = vmatprep.subr.mxu0 0.0
    %811 = vmatpush1.msra.mxu0 %v792
    %812 = vmatprep.subr.mxu0 0.0
    %813 = vmatpush1.msra.mxu0 %v793
    %814 = vmatprep.subr.mxu0 0.0
    %815 = vmatpush1.msra.mxu0 %v794
    %816 = vmatprep.subr.mxu0 0.0
    %817 = vmatpush1.msra.mxu0 0.0
    %818 = vmatprep.subr.mxu0 0.0
    %819 = vmatpush1.msra.mxu0 0.0
    %820 = vmatprep.subr.mxu0 0.0
    %821 = vmatpush1.msra.mxu0 0.0
    %822 = vmatprep.subr.mxu0 0.0
    %823 = vmatpush1.msra.mxu0 0.0
    %824 = vmatprep.subr.mxu0 0.0
    %825 = vmatpush1.msra.mxu0 0.0
    %826 = vmatprep.subr.mxu0 0.0
    %827 = vmatpush1.msra.mxu0 0.0
    %828 = vmatprep.subr.mxu0 0.0
    %829 = vmatpush1.msra.mxu0 0.0
    %830 = vmatprep.subr.mxu0 0.0
    %831 = vmatpush1.msra.mxu0 0.0
    %832 = vmatprep.subr.mxu0 0.0
    %833 = vmatpush1.msra.mxu0 0.0
    %834 = vmatprep.subr.mxu0 0.0
    %835 = vmatpush1.msra.mxu0 0.0
    %836 = vmatprep.subr.mxu0 0.0
    %837 = vmatpush1.msra.mxu0 0.0
    %838 = vmatprep.subr.mxu0 0.0
    %839 = vmatpush1.msra.mxu0 0.0
    %840 = vmatprep.subr.mxu0 0.0
    %841 = vmatpush1.msra.mxu0 0.0
    %842 = vmatprep.subr.mxu0 0.0
    %843 = vmatpush1.msra.mxu0 0.0
    %844 = vmatprep.subr.mxu0 0.0
    %845 = vmatpush1.msra.mxu0 0.0
    %846 = vmatprep.subr.mxu0 0.0
    %847 = vmatpush1.msra.mxu0 0.0
    %848 = vmatprep.subr.mxu0 0.0
    %849 = vmatpush1.msra.mxu0 0.0
    %850 = vmatprep.subr.mxu0 0.0
    %851 = vmatpush1.msra.mxu0 0.0
    %852 = vmatprep.subr.mxu0 0.0
    %853 = vmatpush1.msra.mxu0 0.0
    %854 = vmatprep.subr.mxu0 0.0
    %855 = vmatpush1.msra.mxu0 0.0
    %856 = vmatprep.subr.mxu0 0.0
    %857 = vmatpush1.msra.mxu0 0.0
    %858 = vmatprep.subr.mxu0 0.0
    %859 = vmatpush1.msra.mxu0 0.0
    %860 = vmatprep.subr.mxu0 0.0
    %861 = vmatpush1.msra.mxu0 0.0
    %862 = vmatprep.subr.mxu0 0.0
    %863 = vmatpush1.msra.mxu0 0.0
    %864 = vmatprep.subr.mxu0 0.0
    %865 = vmatpush1.msra.mxu0 0.0
    %866 = vmatprep.subr.mxu0 0.0
    %867 = vmatpush1.msra.mxu0 0.0
    %868 = vmatprep.subr.mxu0 0.0
    %869 = vmatpush1.msra.mxu0 0.0
    %870 = vmatprep.subr.mxu0 0.0
    %871 = vmatpush1.msra.mxu0 0.0
    %872 = vmatprep.mubr.f32.mxu0 0.0
    %873 = vmatmul.mubr.f32.gmra.mrb[0].mxu0 %v803
    %v874 = vpop.f32.mrb[0].mxu0
    %v875 = vadd.f32 %v800, %v874
    %v876 = vpop.f32.mrb[0].mxu0
    %877 = vmatprep.mubr.f32.mxu0 0.0
    %878 = vmatmul.mubr.f32.gmra.mrb[0].mxu0 %v806
    %v879 = vpop.f32.mrb[0].mxu0
    %v880 = vadd.f32 %v800, %v879
    %v881 = vpop.f32.mrb[0].mxu0
    %882 = vdwg.mxu0
    %vm883 = vcmask 130048
    %884 = vst.msk [vmem:[#allocation3] sm:$0xff] %vm883, %v875
    %885 = vst.msk [vmem:[#allocation3 + $0x8] sm:$0xff] %vm883, %v880
    // Predicated region
    $region34: #{tpu_custom_call.1} parent=1 // pred_check
      _
    $region35: #{tpu_custom_call.1} parent=1 // pred_check_branch
      %887 = sbr.rel (0) target = $region37
    $region36: #{tpu_custom_call.1} parent=1 // pred_region
      %s889 = ssub.s32 256, 256
      %890 = vsyncadd [#allocation4], %s889
      %s891 = sshll.u32 [#allocation3], 4
      %s892 = int_to_ptr.vmem [resolvable:$true] %s891
      %897 = dma.vmem_to_hbm [thread:$0]  %s892, 256, %s8, [#allocation4], 128, 128, 8
    $region37: #{tpu_custom_call.1} parent=1 // pred_fallthru
      _
    // Predicated region
    $region38: #{tpu_custom_call.1} parent=1 // pred_check
      _
    $region39: #{tpu_custom_call.1} parent=1 // pred_check_branch
      %899 = sbr.rel (0) target = $region41
    $region40: #{tpu_custom_call.1} parent=1 // pred_region
      %s901 = ssub.s32 32, 32
      %902 = vsyncadd [#allocation6], %s901
      %s904 = sshll.u32 [#allocation5], 4
      %s905 = int_to_ptr.vmem [resolvable:$true] %s904
      %907 = dma.vmem_to_hbm [thread:$0]  %s905, 32, %s9, [#allocation6]
    $region41: #{tpu_custom_call.1} parent=1 // pred_fallthru
      _
    // Predicated region
    $region42: #{tpu_custom_call.1} parent=1 // pred_check
      _
    $region43: #{tpu_custom_call.1} parent=1 // pred_check_branch
      %909 = sbr.rel (0) target = $region45
    $region44: #{tpu_custom_call.1} parent=1 // pred_region
      %s911 = ssub.s32 32, 32
      %912 = vsyncadd [#allocation6], %s911
      %s914 = sshll.u32 [#allocation7], 4
      %s915 = int_to_ptr.vmem [resolvable:$true] %s914
      %917 = dma.vmem_to_hbm [thread:$0]  %s915, 32, %s10, [#allocation6]
    $region45: #{tpu_custom_call.1} parent=1 // pred_fallthru
      _
    // Predicated region
    $region46: #{tpu_custom_call.1} parent=1 // pred_check
      _
    $region47: #{tpu_custom_call.1} parent=1 // pred_check_branch
      %919 = sbr.rel (0) target = $region49
    $region48: #{tpu_custom_call.1} parent=1 // pred_region
      %920 = dma.done [#allocation4], 256
    $region49: #{tpu_custom_call.1} parent=1 // pred_fallthru
      _
    // Predicated region
    $region50: #{tpu_custom_call.1} parent=1 // pred_check
      _
    $region51: #{tpu_custom_call.1} parent=1 // pred_check_branch
      %922 = sbr.rel (0) target = $region53
    $region52: #{tpu_custom_call.1} parent=1 // pred_region
      %923 = dma.done [#allocation6], 32
    $region53: #{tpu_custom_call.1} parent=1 // pred_fallthru
      _
    // Predicated region
    $region54: #{tpu_custom_call.1} parent=1 // pred_check
      _
    $region55: #{tpu_custom_call.1} parent=1 // pred_check_branch
      %925 = sbr.rel (0) target = $region57
    $region56: #{tpu_custom_call.1} parent=1 // pred_region
      %926 = dma.done [#allocation6], 32
    $region57: #{tpu_custom_call.1} parent=1 // pred_fallthru
      _
    %927 = vsyncpa [#allocation4], 1
    %928 = vsyncpa [#allocation6], 1

</llo_original>
